<compile_context>
chip_gen: v5e
topology: v5e:2x2
jax: 0.10.0
libtpu: 0.0.40
codegen_flags: <defaults>
</compile_context>

<pallas_src>
import math
from functools import partial

import jax
import jax.numpy as jnp
from jax.experimental import pallas as pl
from jax.experimental.pallas import tpu as pltpu


def _encoder_layer_kernel(x_ref,
                          ln1_g_ref, ln1_b_ref,
                          w_qkv_ref, b_qkv_ref,
                          wo_ref, bo_ref,
                          ln2_g_ref, ln2_b_ref,
                          w1_ref, b1_ref, w2_ref, b2_ref,
                          out_ref,
                          *, batch, seq, num_heads, eps):
    f32 = jnp.float32
    bf16 = jnp.bfloat16
    B, S, H = batch, seq, num_heads
    E = x_ref.shape[-1]
    Dh = E // H
    scale = 1.0 / math.sqrt(Dh)

    x = x_ref[...].astype(f32)                                   # (B*S, E)

    def layer_norm(v, g, b):
        mu = jnp.mean(v, axis=-1, keepdims=True)
        var = jnp.mean(jnp.square(v - mu), axis=-1, keepdims=True)
        return (v - mu) * jax.lax.rsqrt(var + eps) * g + b

    # ---- pre-LN #1 + fused QKV projection: ONE wide MXU matmul over all rows ----
    x1 = layer_norm(x, ln1_g_ref[...], ln1_b_ref[...])
    qkv = jnp.dot(x1.astype(bf16), w_qkv_ref[...],
                  preferred_element_type=f32) + b_qkv_ref[...]   # (B*S, 3E) f32

    # ---- head/batch split: pure layout (static slices + stack), zero MXU FLOPs ----
    def split_heads(col0):
        parts = [qkv[b * S:(b + 1) * S, col0 + h * Dh: col0 + (h + 1) * Dh]
                 for b in range(B) for h in range(H)]
        return jnp.stack(parts, axis=0).astype(bf16)             # (B*H, S, Dh)

    q = split_heads(0)
    k = split_heads(E)
    v = split_heads(2 * E)

    # ---- batched scaled-dot-product attention, (batch*heads) as leading batch ----
    s = jnp.einsum('bqd,bkd->bqk', q, k,
                   preferred_element_type=f32) * scale           # (B*H, S, S)
    m = jnp.max(s, axis=-1, keepdims=True)
    p = jnp.exp(s - m)                                           # unnormalized probs
    l = jnp.sum(p, axis=-1, keepdims=True)                       # (B*H, S, 1)
    ctx = jnp.einsum('bqk,bkd->bqd', p.astype(bf16), v,
                     preferred_element_type=f32)                 # (B*H, S, Dh)
    # Normalize AFTER p@v: broadcast multiply on (BH,S,Dh) instead of (BH,S,S);
    # reciprocal runs on the EUP slot.
    ctx = ctx * pl.reciprocal(l, approx=True)

    # ---- head merge (lane concat) + ONE (B*S, E) @ (E, E) output projection ----
    rows = [jnp.concatenate([ctx[b * H + h] for h in range(H)], axis=-1)
            for b in range(B)]                                   # B x (S, E)
    ctx2d = jnp.concatenate(rows, axis=0)                        # (B*S, E)
    attn = jnp.dot(ctx2d.astype(bf16), wo_ref[...],
                   preferred_element_type=f32) + bo_ref[...]

    # TODO(synk): attention / MLP dropout are identity here (eval-mode semantics).
    x = x + attn                                                 # residual 1

    # ---- pre-LN #2 + MLP ----
    x2 = layer_norm(x, ln2_g_ref[...], ln2_b_ref[...])
    h1 = jnp.dot(x2.astype(bf16), w1_ref[...],
                 preferred_element_type=f32) + b1_ref[...]       # (B*S, M)
    # tanh-form GELU: transcendental on the EUP slot.
    # TODO(synk): PyTorch nn.GELU() default is exact erf; tanh form differs ~1e-3.
    c = math.sqrt(2.0 / math.pi)
    h1 = 0.5 * h1 * (1.0 + jnp.tanh(c * (h1 + 0.044715 * h1 * h1 * h1)))
    mlp = jnp.dot(h1.astype(bf16), w2_ref[...],
                  preferred_element_type=f32) + b2_ref[...]      # (B*S, E)

    out_ref[...] = (x + mlp).astype(out_ref.dtype)               # residual 2


def transformer_encoder_layer(x, params, *, num_heads, eps=1e-6):
    """x: (S, B, E) float32.  Linear weights pre-transposed so y = x @ W + b."""
    S, B, E = x.shape
    H = num_heads
    Dh = E // H
    M = params["w1"].shape[1]
    bf16 = jnp.bfloat16

    # Fold batch into rows: taller MXU tiles, one grid step (review item for small shapes).
    x2d = jnp.transpose(x, (1, 0, 2)).reshape(B * S, E)

    # Fused QKV weight/bias -> one wide matmul inside the kernel.
    w_qkv = jnp.concatenate([params["wq"], params["wk"], params["wv"]],
                            axis=1).astype(bf16)                  # (E, 3E)
    b_qkv = jnp.concatenate([params["bq"], params["bk"], params["bv"]], axis=1)

    weights = [params["ln1_g"], params["ln1_b"],
               w_qkv, b_qkv,
               params["wo"].astype(bf16), params["bo"],
               params["ln2_g"], params["ln2_b"],
               params["w1"].astype(bf16), params["b1"],
               params["w2"].astype(bf16), params["b2"]]

    # ---- cost estimate (selector FLOPs removed) ----
    BS = B * S
    flops = (2 * BS * E * 3 * E                 # fused QKV projection
             + 2 * (B * H) * S * S * Dh * 2     # q@k^T and p@v
             + 2 * BS * E * E                   # output projection
             + 2 * BS * E * M * 2)              # MLP (two matmuls)
    transcendentals = (B * H) * S * S + BS * M  # softmax exp + GELU tanh
    operand_bytes = (int(x2d.size) * x2d.dtype.itemsize
                     + sum(int(w.size) * w.dtype.itemsize for w in weights))
    out_bytes = BS * E * 4
    bytes_accessed = operand_bytes + out_bytes

    # ---- VMEM budget derived from actual shapes (not a fixed 32 MiB) ----
    intermediate_bytes = 4 * (BS * 3 * E + (B * H) * S * S + (B * H) * S * Dh
                              + BS * M + 4 * BS * E)
    vmem_limit = int(min(128 * 1024 * 1024,
                         max(1 << 20,
                             2 * (operand_bytes + out_bytes)
                             + 2 * intermediate_bytes + (1 << 20))))

    def spec2d(shape):
        return pl.BlockSpec(shape, lambda i: (0, 0))

    out2d = pl.pallas_call(
        partial(_encoder_layer_kernel, batch=B, seq=S, num_heads=H, eps=eps),
        out_shape=jax.ShapeDtypeStruct((B * S, E), x.dtype),
        grid=(1,),
        in_specs=[spec2d(x2d.shape)] + [spec2d(w.shape) for w in weights],
        out_specs=spec2d((B * S, E)),
        compiler_params=pltpu.CompilerParams(
            dimension_semantics=("arbitrary",),
            vmem_limit_bytes=vmem_limit),
        cost_estimate=pl.CostEstimate(flops=int(flops),
                                      transcendentals=int(transcendentals),
                                      bytes_accessed=int(bytes_accessed)),
    )(x2d, *weights)

    return out2d.reshape(B, S, E).transpose(1, 0, 2)              # back to (S, B, E)


def init_params(key, embed_dim, mlp_dim):
    """Deterministic synthetic parameters with PyTorch-compatible shapes
    (Linear weights stored already transposed to (in, out))."""
    ks = jax.random.split(key, 12)
    s = 0.05

    def rnd(k, shape):
        return jax.random.normal(k, shape, jnp.float32) * s

    E, M = embed_dim, mlp_dim
    return {
        "ln1_g": jnp.ones((1, E), jnp.float32),
        "ln1_b": jnp.zeros((1, E), jnp.float32),
        "wq": rnd(ks[0], (E, E)), "bq": rnd(ks[1], (1, E)),
        "wk": rnd(ks[2], (E, E)), "bk": rnd(ks[3], (1, E)),
        "wv": rnd(ks[4], (E, E)), "bv": rnd(ks[5], (1, E)),
        "wo": rnd(ks[6], (E, E)), "bo": rnd(ks[7], (1, E)),
        "ln2_g": jnp.ones((1, E), jnp.float32),
        "ln2_b": jnp.zeros((1, E), jnp.float32),
        "w1": rnd(ks[8], (E, M)), "b1": rnd(ks[9], (1, M)),
        "w2": rnd(ks[10], (M, E)), "b2": rnd(ks[11], (1, E)),
    }


def _reference(x, params, *, num_heads, eps):
    """Pure-JAX f32 reference of the same forward pass (tanh GELU)."""
    S, B, E = x.shape
    H = num_heads
    Dh = E // H

    def ln(v, g, b):
        mu = jnp.mean(v, -1, keepdims=True)
        var = jnp.mean(jnp.square(v - mu), -1, keepdims=True)
        return (v - mu) * jax.lax.rsqrt(var + eps) * g + b

    x1 = ln(x, params["ln1_g"], params["ln1_b"])
    q = x1 @ params["wq"] + params["bq"]
    k = x1 @ params["wk"] + params["bk"]
    v = x1 @ params["wv"] + params["bv"]

    def heads(t):
        return t.reshape(S, B, H, Dh).transpose(1, 2, 0, 3)       # (B,H,S,Dh)

    qh, kh, vh = heads(q), heads(k), heads(v)
    s = jnp.einsum('bhqd,bhkd->bhqk', qh, kh) / math.sqrt(Dh)
    p = jax.nn.softmax(s, axis=-1)
    ctx = jnp.einsum('bhqk,bhkd->bhqd', p, vh)
    ctx = ctx.transpose(2, 0, 1, 3).reshape(S, B, E)
    x = x + (ctx @ params["wo"] + params["bo"])
    x2 = ln(x, params["ln2_g"], params["ln2_b"])
    h1 = x2 @ params["w1"] + params["b1"]
    c = math.sqrt(2.0 / math.pi)
    h1 = 0.5 * h1 * (1.0 + jnp.tanh(c * (h1 + 0.044715 * h1 ** 3)))
    return x + (h1 @ params["w2"] + params["b2"])


if __name__ == "__main__":
    # Config: num_heads=4, embed_dim (config "head_dim")=32, mlp_dim=64, eps=1e-6.
    S, B, E, H, M = 8, 2, 32, 4, 64

    key = jax.random.PRNGKey(0)
    k_x, k_p = jax.random.split(key)
    x = jax.random.normal(k_x, (S, B, E), jnp.float32)
    params = init_params(k_p, E, M)

    out = transformer_encoder_layer(x, params, num_heads=H, eps=1e-6)
    out = jax.block_until_ready(out)

    assert out.shape == (S, B, E) and out.dtype == jnp.float32
    assert bool(jnp.all(jnp.isfinite(out)))

    ref = _reference(x, params, num_heads=H, eps=1e-6)
    max_err = float(jnp.max(jnp.abs(out - ref)))
    assert max_err < 1e-1, f"max abs error vs f32 reference: {max_err}"

    print("KERNEL_OK")
</pallas_src>

<mosaic_0001>
module attributes {stable_mosaic.version = 11 : i64} {
  func.func @_encoder_layer_kernel(%arg0: i32, %arg1: memref<16x32xf32, #tpu.memory_space<vmem>>, %arg2: memref<1x32xf32, #tpu.memory_space<vmem>>, %arg3: memref<1x32xf32, #tpu.memory_space<vmem>>, %arg4: memref<32x96xbf16, #tpu.memory_space<vmem>>, %arg5: memref<1x96xf32, #tpu.memory_space<vmem>>, %arg6: memref<32x32xbf16, #tpu.memory_space<vmem>>, %arg7: memref<1x32xf32, #tpu.memory_space<vmem>>, %arg8: memref<1x32xf32, #tpu.memory_space<vmem>>, %arg9: memref<1x32xf32, #tpu.memory_space<vmem>>, %arg10: memref<32x64xbf16, #tpu.memory_space<vmem>>, %arg11: memref<1x64xf32, #tpu.memory_space<vmem>>, %arg12: memref<64x32xbf16, #tpu.memory_space<vmem>>, %arg13: memref<1x32xf32, #tpu.memory_space<vmem>>, %arg14: memref<16x32xf32, #tpu.memory_space<vmem>>) attributes {dimension_semantics = [#tpu.dimension_semantics<arbitrary>], iteration_bounds = array<i64: 1>, scalar_prefetch = 0 : i64, scratch_operands = 0 : i64, tpu.core_type = #tpu.core_type<tc>, window_params = [{pipeline_mode = #tpu.pipeline_mode<synchronous>, transform_indices = @transform_0, window_bounds = array<i64: 16, 32>}, {pipeline_mode = #tpu.pipeline_mode<synchronous>, transform_indices = @transform_1, window_bounds = array<i64: 1, 32>}, {pipeline_mode = #tpu.pipeline_mode<synchronous>, transform_indices = @transform_2, window_bounds = array<i64: 1, 32>}, {pipeline_mode = #tpu.pipeline_mode<synchronous>, transform_indices = @transform_3, window_bounds = array<i64: 32, 96>}, {pipeline_mode = #tpu.pipeline_mode<synchronous>, transform_indices = @transform_4, window_bounds = array<i64: 1, 96>}, {pipeline_mode = #tpu.pipeline_mode<synchronous>, transform_indices = @transform_5, window_bounds = array<i64: 32, 32>}, {pipeline_mode = #tpu.pipeline_mode<synchronous>, transform_indices = @transform_6, window_bounds = array<i64: 1, 32>}, {pipeline_mode = #tpu.pipeline_mode<synchronous>, transform_indices = @transform_7, window_bounds = array<i64: 1, 32>}, {pipeline_mode = #tpu.pipeline_mode<synchronous>, transform_indices = @transform_8, window_bounds = array<i64: 1, 32>}, {pipeline_mode = #tpu.pipeline_mode<synchronous>, transform_indices = @transform_9, window_bounds = array<i64: 32, 64>}, {pipeline_mode = #tpu.pipeline_mode<synchronous>, transform_indices = @transform_10, window_bounds = array<i64: 1, 64>}, {pipeline_mode = #tpu.pipeline_mode<synchronous>, transform_indices = @transform_11, window_bounds = array<i64: 64, 32>}, {pipeline_mode = #tpu.pipeline_mode<synchronous>, transform_indices = @transform_12, window_bounds = array<i64: 1, 32>}, {pipeline_mode = #tpu.pipeline_mode<synchronous>, transform_indices = @transform_13, window_bounds = array<i64: 16, 32>}]} {
    %c0 = arith.constant 0 : index
    %c0_0 = arith.constant 0 : index
    %0 = vector.load %arg1[%c0, %c0_0] : memref<16x32xf32, #tpu.memory_space<vmem>>, vector<16x32xf32>
    %c0_1 = arith.constant 0 : index
    %c0_2 = arith.constant 0 : index
    %1 = vector.load %arg2[%c0_1, %c0_2] : memref<1x32xf32, #tpu.memory_space<vmem>>, vector<1x32xf32>
    %c0_3 = arith.constant 0 : index
    %c0_4 = arith.constant 0 : index
    %2 = vector.load %arg3[%c0_3, %c0_4] : memref<1x32xf32, #tpu.memory_space<vmem>>, vector<1x32xf32>
    %cst = arith.constant dense<0.000000e+00> : vector<16xf32>
    %3 = vector.multi_reduction <add>, %0, %cst [1] : vector<16x32xf32> to vector<16xf32>
    %4 = vector.shape_cast %3 : vector<16xf32> to vector<16x1xf32>
    %cst_5 = arith.constant 3.200000e+01 : f32
    %5 = vector.broadcast %cst_5 : f32 to vector<16x1xf32>
    %6 = arith.divf %4, %5 : vector<16x1xf32>
    %7 = vector.broadcast %6 : vector<16x1xf32> to vector<16x32xf32>
    %8 = arith.subf %0, %7 : vector<16x32xf32>
    %9 = arith.mulf %8, %8 : vector<16x32xf32>
    %cst_6 = arith.constant dense<0.000000e+00> : vector<16xf32>
    %10 = vector.multi_reduction <add>, %9, %cst_6 [1] : vector<16x32xf32> to vector<16xf32>
    %11 = vector.shape_cast %10 : vector<16xf32> to vector<16x1xf32>
    %cst_7 = arith.constant 3.200000e+01 : f32
    %12 = vector.broadcast %cst_7 : f32 to vector<16x1xf32>
    %13 = arith.divf %11, %12 : vector<16x1xf32>
    %14 = vector.broadcast %6 : vector<16x1xf32> to vector<16x32xf32>
    %15 = arith.subf %0, %14 : vector<16x32xf32>
    %cst_8 = arith.constant 9.99999997E-7 : f32
    %16 = vector.broadcast %cst_8 : f32 to vector<16x1xf32>
    %17 = arith.addf %13, %16 : vector<16x1xf32>
    %18 = math.rsqrt %17 : vector<16x1xf32>
    %19 = vector.broadcast %18 : vector<16x1xf32> to vector<16x32xf32>
    %20 = arith.mulf %15, %19 : vector<16x32xf32>
    %21 = vector.broadcast %1 : vector<1x32xf32> to vector<16x32xf32>
    %22 = arith.mulf %20, %21 : vector<16x32xf32>
    %23 = vector.broadcast %2 : vector<1x32xf32> to vector<16x32xf32>
    %24 = arith.addf %22, %23 : vector<16x32xf32>
    %25 = arith.truncf %24 : vector<16x32xf32> to vector<16x32xbf16>
    %c0_9 = arith.constant 0 : index
    %c0_10 = arith.constant 0 : index
    %26 = vector.load %arg4[%c0_9, %c0_10] : memref<32x96xbf16, #tpu.memory_space<vmem>>, vector<32x96xbf16>
    %cst_11 = arith.constant dense<0.000000e+00> : vector<16x96xf32>
    %27 = tpu.matmul %25, %26, %cst_11 {dimension_numbers = #tpu.dot_dimension_numbers<[1], [0], [0], [1], [0, 0, 1, 1], [], []>} : vector<16x32xbf16>, vector<32x96xbf16>, vector<16x96xf32> -> vector<16x96xf32>
    %c0_12 = arith.constant 0 : index
    %c0_13 = arith.constant 0 : index
    %28 = vector.load %arg5[%c0_12, %c0_13] : memref<1x96xf32, #tpu.memory_space<vmem>>, vector<1x96xf32>
    %29 = vector.broadcast %28 : vector<1x96xf32> to vector<16x96xf32>
    %30 = arith.addf %27, %29 : vector<16x96xf32>
    %31 = vector.extract_strided_slice %30 {offsets = [0, 0], sizes = [8, 8], strides = [1, 1]} : vector<16x96xf32> to vector<8x8xf32>
    %32 = vector.extract_strided_slice %30 {offsets = [0, 8], sizes = [8, 8], strides = [1, 1]} : vector<16x96xf32> to vector<8x8xf32>
    %33 = vector.extract_strided_slice %30 {offsets = [0, 16], sizes = [8, 8], strides = [1, 1]} : vector<16x96xf32> to vector<8x8xf32>
    %34 = vector.extract_strided_slice %30 {offsets = [0, 24], sizes = [8, 8], strides = [1, 1]} : vector<16x96xf32> to vector<8x8xf32>
    %35 = vector.extract_strided_slice %30 {offsets = [8, 0], sizes = [8, 8], strides = [1, 1]} : vector<16x96xf32> to vector<8x8xf32>
    %36 = vector.extract_strided_slice %30 {offsets = [8, 8], sizes = [8, 8], strides = [1, 1]} : vector<16x96xf32> to vector<8x8xf32>
    %37 = vector.extract_strided_slice %30 {offsets = [8, 16], sizes = [8, 8], strides = [1, 1]} : vector<16x96xf32> to vector<8x8xf32>
    %38 = vector.extract_strided_slice %30 {offsets = [8, 24], sizes = [8, 8], strides = [1, 1]} : vector<16x96xf32> to vector<8x8xf32>
    %39 = vector.shape_cast %31 : vector<8x8xf32> to vector<1x8x8xf32>
    %40 = vector.shape_cast %32 : vector<8x8xf32> to vector<1x8x8xf32>
    %41 = vector.shape_cast %33 : vector<8x8xf32> to vector<1x8x8xf32>
    %42 = vector.shape_cast %34 : vector<8x8xf32> to vector<1x8x8xf32>
    %43 = vector.shape_cast %35 : vector<8x8xf32> to vector<1x8x8xf32>
    %44 = vector.shape_cast %36 : vector<8x8xf32> to vector<1x8x8xf32>
    %45 = vector.shape_cast %37 : vector<8x8xf32> to vector<1x8x8xf32>
    %46 = vector.shape_cast %38 : vector<8x8xf32> to vector<1x8x8xf32>
    %47 = tpu.concatenate %39, %40, %41, %42, %43, %44, %45, %46 in 0 : vector<1x8x8xf32>, vector<1x8x8xf32>, vector<1x8x8xf32>, vector<1x8x8xf32>, vector<1x8x8xf32>, vector<1x8x8xf32>, vector<1x8x8xf32>, vector<1x8x8xf32> -> vector<8x8x8xf32>
    %48 = arith.truncf %47 : vector<8x8x8xf32> to vector<8x8x8xbf16>
    %49 = vector.extract_strided_slice %30 {offsets = [0, 32], sizes = [8, 8], strides = [1, 1]} : vector<16x96xf32> to vector<8x8xf32>
    %50 = vector.extract_strided_slice %30 {offsets = [0, 40], sizes = [8, 8], strides = [1, 1]} : vector<16x96xf32> to vector<8x8xf32>
    %51 = vector.extract_strided_slice %30 {offsets = [0, 48], sizes = [8, 8], strides = [1, 1]} : vector<16x96xf32> to vector<8x8xf32>
    %52 = vector.extract_strided_slice %30 {offsets = [0, 56], sizes = [8, 8], strides = [1, 1]} : vector<16x96xf32> to vector<8x8xf32>
    %53 = vector.extract_strided_slice %30 {offsets = [8, 32], sizes = [8, 8], strides = [1, 1]} : vector<16x96xf32> to vector<8x8xf32>
    %54 = vector.extract_strided_slice %30 {offsets = [8, 40], sizes = [8, 8], strides = [1, 1]} : vector<16x96xf32> to vector<8x8xf32>
    %55 = vector.extract_strided_slice %30 {offsets = [8, 48], sizes = [8, 8], strides = [1, 1]} : vector<16x96xf32> to vector<8x8xf32>
    %56 = vector.extract_strided_slice %30 {offsets = [8, 56], sizes = [8, 8], strides = [1, 1]} : vector<16x96xf32> to vector<8x8xf32>
    %57 = vector.shape_cast %49 : vector<8x8xf32> to vector<1x8x8xf32>
    %58 = vector.shape_cast %50 : vector<8x8xf32> to vector<1x8x8xf32>
    %59 = vector.shape_cast %51 : vector<8x8xf32> to vector<1x8x8xf32>
    %60 = vector.shape_cast %52 : vector<8x8xf32> to vector<1x8x8xf32>
    %61 = vector.shape_cast %53 : vector<8x8xf32> to vector<1x8x8xf32>
    %62 = vector.shape_cast %54 : vector<8x8xf32> to vector<1x8x8xf32>
    %63 = vector.shape_cast %55 : vector<8x8xf32> to vector<1x8x8xf32>
    %64 = vector.shape_cast %56 : vector<8x8xf32> to vector<1x8x8xf32>
    %65 = tpu.concatenate %57, %58, %59, %60, %61, %62, %63, %64 in 0 : vector<1x8x8xf32>, vector<1x8x8xf32>, vector<1x8x8xf32>, vector<1x8x8xf32>, vector<1x8x8xf32>, vector<1x8x8xf32>, vector<1x8x8xf32>, vector<1x8x8xf32> -> vector<8x8x8xf32>
    %66 = arith.truncf %65 : vector<8x8x8xf32> to vector<8x8x8xbf16>
    %67 = vector.extract_strided_slice %30 {offsets = [0, 64], sizes = [8, 8], strides = [1, 1]} : vector<16x96xf32> to vector<8x8xf32>
    %68 = vector.extract_strided_slice %30 {offsets = [0, 72], sizes = [8, 8], strides = [1, 1]} : vector<16x96xf32> to vector<8x8xf32>
    %69 = vector.extract_strided_slice %30 {offsets = [0, 80], sizes = [8, 8], strides = [1, 1]} : vector<16x96xf32> to vector<8x8xf32>
    %70 = vector.extract_strided_slice %30 {offsets = [0, 88], sizes = [8, 8], strides = [1, 1]} : vector<16x96xf32> to vector<8x8xf32>
    %71 = vector.extract_strided_slice %30 {offsets = [8, 64], sizes = [8, 8], strides = [1, 1]} : vector<16x96xf32> to vector<8x8xf32>
    %72 = vector.extract_strided_slice %30 {offsets = [8, 72], sizes = [8, 8], strides = [1, 1]} : vector<16x96xf32> to vector<8x8xf32>
    %73 = vector.extract_strided_slice %30 {offsets = [8, 80], sizes = [8, 8], strides = [1, 1]} : vector<16x96xf32> to vector<8x8xf32>
    %74 = vector.extract_strided_slice %30 {offsets = [8, 88], sizes = [8, 8], strides = [1, 1]} : vector<16x96xf32> to vector<8x8xf32>
    %75 = vector.shape_cast %67 : vector<8x8xf32> to vector<1x8x8xf32>
    %76 = vector.shape_cast %68 : vector<8x8xf32> to vector<1x8x8xf32>
    %77 = vector.shape_cast %69 : vector<8x8xf32> to vector<1x8x8xf32>
    %78 = vector.shape_cast %70 : vector<8x8xf32> to vector<1x8x8xf32>
    %79 = vector.shape_cast %71 : vector<8x8xf32> to vector<1x8x8xf32>
    %80 = vector.shape_cast %72 : vector<8x8xf32> to vector<1x8x8xf32>
    %81 = vector.shape_cast %73 : vector<8x8xf32> to vector<1x8x8xf32>
    %82 = vector.shape_cast %74 : vector<8x8xf32> to vector<1x8x8xf32>
    %83 = tpu.concatenate %75, %76, %77, %78, %79, %80, %81, %82 in 0 : vector<1x8x8xf32>, vector<1x8x8xf32>, vector<1x8x8xf32>, vector<1x8x8xf32>, vector<1x8x8xf32>, vector<1x8x8xf32>, vector<1x8x8xf32>, vector<1x8x8xf32> -> vector<8x8x8xf32>
    %84 = arith.truncf %83 : vector<8x8x8xf32> to vector<8x8x8xbf16>
    "tpu.trace_start"() <{level = 10 : i32, message = "bqd,bkd->bqk"}> : () -> ()
    %cst_14 = arith.constant dense<0.000000e+00> : vector<8x8x8xf32>
    %85 = tpu.matmul %48, %66, %cst_14 {dimension_numbers = #tpu.dot_dimension_numbers<[2], [2], [1], [1], [0, 0, 0, 1, 1, 1], [0], [0]>} : vector<8x8x8xbf16>, vector<8x8x8xbf16>, vector<8x8x8xf32> -> vector<8x8x8xf32>
    "tpu.trace_stop"() : () -> ()
    %cst_15 = arith.constant 0.353553385 : f32
    %86 = vector.broadcast %cst_15 : f32 to vector<8x8x8xf32>
    %87 = arith.mulf %85, %86 : vector<8x8x8xf32>
    %cst_16 = arith.constant dense<0xFF800000> : vector<8x8xf32>
    %88 = vector.multi_reduction <maximumf>, %87, %cst_16 [2] : vector<8x8x8xf32> to vector<8x8xf32>
    %89 = vector.shape_cast %88 : vector<8x8xf32> to vector<8x8x1xf32>
    %90 = vector.broadcast %89 : vector<8x8x1xf32> to vector<8x8x8xf32>
    %91 = arith.subf %87, %90 : vector<8x8x8xf32>
    %92 = math.exp %91 : vector<8x8x8xf32>
    %cst_17 = arith.constant dense<0.000000e+00> : vector<8x8xf32>
    %93 = vector.multi_reduction <add>, %92, %cst_17 [2] : vector<8x8x8xf32> to vector<8x8xf32>
    %94 = vector.shape_cast %93 : vector<8x8xf32> to vector<8x8x1xf32>
    %95 = arith.truncf %92 : vector<8x8x8xf32> to vector<8x8x8xbf16>
    "tpu.trace_start"() <{level = 10 : i32, message = "bqk,bkd->bqd"}> : () -> ()
    %cst_18 = arith.constant dense<0.000000e+00> : vector<8x8x8xf32>
    %96 = tpu.matmul %95, %84, %cst_18 {dimension_numbers = #tpu.dot_dimension_numbers<[2], [1], [1], [2], [0, 0, 0, 1, 1, 2], [0], [0]>} : vector<8x8x8xbf16>, vector<8x8x8xbf16>, vector<8x8x8xf32> -> vector<8x8x8xf32>
    "tpu.trace_stop"() : () -> ()
    %97 = tpu.reciprocal %94 {approx = true} : vector<8x8x1xf32> -> vector<8x8x1xf32>
    %98 = vector.broadcast %97 : vector<8x8x1xf32> to vector<8x8x8xf32>
    %99 = arith.mulf %96, %98 : vector<8x8x8xf32>
    %100 = vector.extract_strided_slice %99 {offsets = [0, 0, 0], sizes = [1, 8, 8], strides = [1, 1, 1]} : vector<8x8x8xf32> to vector<1x8x8xf32>
    %101 = vector.shape_cast %100 : vector<1x8x8xf32> to vector<8x8xf32>
    %102 = vector.extract_strided_slice %99 {offsets = [1, 0, 0], sizes = [1, 8, 8], strides = [1, 1, 1]} : vector<8x8x8xf32> to vector<1x8x8xf32>
    %103 = vector.shape_cast %102 : vector<1x8x8xf32> to vector<8x8xf32>
    %104 = vector.extract_strided_slice %99 {offsets = [2, 0, 0], sizes = [1, 8, 8], strides = [1, 1, 1]} : vector<8x8x8xf32> to vector<1x8x8xf32>
    %105 = vector.shape_cast %104 : vector<1x8x8xf32> to vector<8x8xf32>
    %106 = vector.extract_strided_slice %99 {offsets = [3, 0, 0], sizes = [1, 8, 8], strides = [1, 1, 1]} : vector<8x8x8xf32> to vector<1x8x8xf32>
    %107 = vector.shape_cast %106 : vector<1x8x8xf32> to vector<8x8xf32>
    %108 = tpu.concatenate %101, %103, %105, %107 in 1 : vector<8x8xf32>, vector<8x8xf32>, vector<8x8xf32>, vector<8x8xf32> -> vector<8x32xf32>
    %109 = vector.extract_strided_slice %99 {offsets = [4, 0, 0], sizes = [1, 8, 8], strides = [1, 1, 1]} : vector<8x8x8xf32> to vector<1x8x8xf32>
    %110 = vector.shape_cast %109 : vector<1x8x8xf32> to vector<8x8xf32>
    %111 = vector.extract_strided_slice %99 {offsets = [5, 0, 0], sizes = [1, 8, 8], strides = [1, 1, 1]} : vector<8x8x8xf32> to vector<1x8x8xf32>
    %112 = vector.shape_cast %111 : vector<1x8x8xf32> to vector<8x8xf32>
    %113 = vector.extract_strided_slice %99 {offsets = [6, 0, 0], sizes = [1, 8, 8], strides = [1, 1, 1]} : vector<8x8x8xf32> to vector<1x8x8xf32>
    %114 = vector.shape_cast %113 : vector<1x8x8xf32> to vector<8x8xf32>
    %115 = vector.extract_strided_slice %99 {offsets = [7, 0, 0], sizes = [1, 8, 8], strides = [1, 1, 1]} : vector<8x8x8xf32> to vector<1x8x8xf32>
    %116 = vector.shape_cast %115 : vector<1x8x8xf32> to vector<8x8xf32>
    %117 = tpu.concatenate %110, %112, %114, %116 in 1 : vector<8x8xf32>, vector<8x8xf32>, vector<8x8xf32>, vector<8x8xf32> -> vector<8x32xf32>
    %118 = tpu.concatenate %108, %117 in 0 : vector<8x32xf32>, vector<8x32xf32> -> vector<16x32xf32>
    %119 = arith.truncf %118 : vector<16x32xf32> to vector<16x32xbf16>
    %c0_19 = arith.constant 0 : index
    %c0_20 = arith.constant 0 : index
    %120 = vector.load %arg6[%c0_19, %c0_20] : memref<32x32xbf16, #tpu.memory_space<vmem>>, vector<32x32xbf16>
    %cst_21 = arith.constant dense<0.000000e+00> : vector<16x32xf32>
    %121 = tpu.matmul %119, %120, %cst_21 {dimension_numbers = #tpu.dot_dimension_numbers<[1], [0], [0], [1], [0, 0, 1, 1], [], []>} : vector<16x32xbf16>, vector<32x32xbf16>, vector<16x32xf32> -> vector<16x32xf32>
    %c0_22 = arith.constant 0 : index
    %c0_23 = arith.constant 0 : index
    %122 = vector.load %arg7[%c0_22, %c0_23] : memref<1x32xf32, #tpu.memory_space<vmem>>, vector<1x32xf32>
    %123 = vector.broadcast %122 : vector<1x32xf32> to vector<16x32xf32>
    %124 = arith.addf %121, %123 : vector<16x32xf32>
    %125 = arith.addf %0, %124 : vector<16x32xf32>
    %c0_24 = arith.constant 0 : index
    %c0_25 = arith.constant 0 : index
    %126 = vector.load %arg8[%c0_24, %c0_25] : memref<1x32xf32, #tpu.memory_space<vmem>>, vector<1x32xf32>
    %c0_26 = arith.constant 0 : index
    %c0_27 = arith.constant 0 : index
    %127 = vector.load %arg9[%c0_26, %c0_27] : memref<1x32xf32, #tpu.memory_space<vmem>>, vector<1x32xf32>
    %cst_28 = arith.constant dense<0.000000e+00> : vector<16xf32>
    %128 = vector.multi_reduction <add>, %125, %cst_28 [1] : vector<16x32xf32> to vector<16xf32>
    %129 = vector.shape_cast %128 : vector<16xf32> to vector<16x1xf32>
    %cst_29 = arith.constant 3.200000e+01 : f32
    %130 = vector.broadcast %cst_29 : f32 to vector<16x1xf32>
    %131 = arith.divf %129, %130 : vector<16x1xf32>
    %132 = vector.broadcast %131 : vector<16x1xf32> to vector<16x32xf32>
    %133 = arith.subf %125, %132 : vector<16x32xf32>
    %134 = arith.mulf %133, %133 : vector<16x32xf32>
    %cst_30 = arith.constant dense<0.000000e+00> : vector<16xf32>
    %135 = vector.multi_reduction <add>, %134, %cst_30 [1] : vector<16x32xf32> to vector<16xf32>
    %136 = vector.shape_cast %135 : vector<16xf32> to vector<16x1xf32>
    %cst_31 = arith.constant 3.200000e+01 : f32
    %137 = vector.broadcast %cst_31 : f32 to vector<16x1xf32>
    %138 = arith.divf %136, %137 : vector<16x1xf32>
    %139 = vector.broadcast %131 : vector<16x1xf32> to vector<16x32xf32>
    %140 = arith.subf %125, %139 : vector<16x32xf32>
    %cst_32 = arith.constant 9.99999997E-7 : f32
    %141 = vector.broadcast %cst_32 : f32 to vector<16x1xf32>
    %142 = arith.addf %138, %141 : vector<16x1xf32>
    %143 = math.rsqrt %142 : vector<16x1xf32>
    %144 = vector.broadcast %143 : vector<16x1xf32> to vector<16x32xf32>
    %145 = arith.mulf %140, %144 : vector<16x32xf32>
    %146 = vector.broadcast %126 : vector<1x32xf32> to vector<16x32xf32>
    %147 = arith.mulf %145, %146 : vector<16x32xf32>
    %148 = vector.broadcast %127 : vector<1x32xf32> to vector<16x32xf32>
    %149 = arith.addf %147, %148 : vector<16x32xf32>
    %150 = arith.truncf %149 : vector<16x32xf32> to vector<16x32xbf16>
    %c0_33 = arith.constant 0 : index
    %c0_34 = arith.constant 0 : index
    %151 = vector.load %arg10[%c0_33, %c0_34] : memref<32x64xbf16, #tpu.memory_space<vmem>>, vector<32x64xbf16>
    %cst_35 = arith.constant dense<0.000000e+00> : vector<16x64xf32>
    %152 = tpu.matmul %150, %151, %cst_35 {dimension_numbers = #tpu.dot_dimension_numbers<[1], [0], [0], [1], [0, 0, 1, 1], [], []>} : vector<16x32xbf16>, vector<32x64xbf16>, vector<16x64xf32> -> vector<16x64xf32>
    %c0_36 = arith.constant 0 : index
    %c0_37 = arith.constant 0 : index
    %153 = vector.load %arg11[%c0_36, %c0_37] : memref<1x64xf32, #tpu.memory_space<vmem>>, vector<1x64xf32>
    %154 = vector.broadcast %153 : vector<1x64xf32> to vector<16x64xf32>
    %155 = arith.addf %152, %154 : vector<16x64xf32>
    %cst_38 = arith.constant 5.000000e-01 : f32
    %156 = vector.broadcast %cst_38 : f32 to vector<16x64xf32>
    %157 = arith.mulf %156, %155 : vector<16x64xf32>
    %cst_39 = arith.constant 4.471500e-02 : f32
    %158 = vector.broadcast %cst_39 : f32 to vector<16x64xf32>
    %159 = arith.mulf %158, %155 : vector<16x64xf32>
    %160 = arith.mulf %159, %155 : vector<16x64xf32>
    %161 = arith.mulf %160, %155 : vector<16x64xf32>
    %162 = arith.addf %155, %161 : vector<16x64xf32>
    %cst_40 = arith.constant 0.797884583 : f32
    %163 = vector.broadcast %cst_40 : f32 to vector<16x64xf32>
    %164 = arith.mulf %163, %162 : vector<16x64xf32>
    %165 = math.tanh %164 : vector<16x64xf32>
    %cst_41 = arith.constant 1.000000e+00 : f32
    %166 = vector.broadcast %cst_41 : f32 to vector<16x64xf32>
    %167 = arith.addf %166, %165 : vector<16x64xf32>
    %168 = arith.mulf %157, %167 : vector<16x64xf32>
    %169 = arith.truncf %168 : vector<16x64xf32> to vector<16x64xbf16>
    %c0_42 = arith.constant 0 : index
    %c0_43 = arith.constant 0 : index
    %170 = vector.load %arg12[%c0_42, %c0_43] : memref<64x32xbf16, #tpu.memory_space<vmem>>, vector<64x32xbf16>
    %cst_44 = arith.constant dense<0.000000e+00> : vector<16x32xf32>
    %171 = tpu.matmul %169, %170, %cst_44 {dimension_numbers = #tpu.dot_dimension_numbers<[1], [0], [0], [1], [0, 0, 1, 1], [], []>} : vector<16x64xbf16>, vector<64x32xbf16>, vector<16x32xf32> -> vector<16x32xf32>
    %c0_45 = arith.constant 0 : index
    %c0_46 = arith.constant 0 : index
    %172 = vector.load %arg13[%c0_45, %c0_46] : memref<1x32xf32, #tpu.memory_space<vmem>>, vector<1x32xf32>
    %173 = vector.broadcast %172 : vector<1x32xf32> to vector<16x32xf32>
    %174 = arith.addf %171, %173 : vector<16x32xf32>
    %175 = arith.addf %125, %174 : vector<16x32xf32>
    %c0_47 = arith.constant 0 : index
    %c0_48 = arith.constant 0 : index
    %176 = vector.load %arg14[%c0_47, %c0_48] : memref<16x32xf32, #tpu.memory_space<vmem>>, vector<16x32xf32>
    tpu.vector_store %arg14[%c0_47, %c0_48], %175 {strides = array<i32>} : memref<16x32xf32, #tpu.memory_space<vmem>>, vector<16x32xf32>,
    return
  }
  func.func @transform_0(%arg0: i32) -> (i32, i32) {
    %c0_i32 = arith.constant 0 : i32
    %c0_i32_0 = arith.constant 0 : i32
    %c0_i32_1 = arith.constant 0 : i32
    return %c0_i32, %c0_i32_0 : i32, i32
  }
  func.func @transform_1(%arg0: i32) -> (i32, i32) {
    %c0_i32 = arith.constant 0 : i32
    %c0_i32_0 = arith.constant 0 : i32
    %c0_i32_1 = arith.constant 0 : i32
    return %c0_i32, %c0_i32_0 : i32, i32
  }
  func.func @transform_2(%arg0: i32) -> (i32, i32) {
    %c0_i32 = arith.constant 0 : i32
    %c0_i32_0 = arith.constant 0 : i32
    %c0_i32_1 = arith.constant 0 : i32
    return %c0_i32, %c0_i32_0 : i32, i32
  }
  func.func @transform_3(%arg0: i32) -> (i32, i32) {
    %c0_i32 = arith.constant 0 : i32
    %c0_i32_0 = arith.constant 0 : i32
    %c0_i32_1 = arith.constant 0 : i32
    return %c0_i32, %c0_i32_0 : i32, i32
  }
  func.func @transform_4(%arg0: i32) -> (i32, i32) {
    %c0_i32 = arith.constant 0 : i32
    %c0_i32_0 = arith.constant 0 : i32
    %c0_i32_1 = arith.constant 0 : i32
    return %c0_i32, %c0_i32_0 : i32, i32
  }
  func.func @transform_5(%arg0: i32) -> (i32, i32) {
    %c0_i32 = arith.constant 0 : i32
    %c0_i32_0 = arith.constant 0 : i32
    %c0_i32_1 = arith.constant 0 : i32
    return %c0_i32, %c0_i32_0 : i32, i32
  }
  func.func @transform_6(%arg0: i32) -> (i32, i32) {
    %c0_i32 = arith.constant 0 : i32
    %c0_i32_0 = arith.constant 0 : i32
    %c0_i32_1 = arith.constant 0 : i32
    return %c0_i32, %c0_i32_0 : i32, i32
  }
  func.func @transform_7(%arg0: i32) -> (i32, i32) {
    %c0_i32 = arith.constant 0 : i32
    %c0_i32_0 = arith.constant 0 : i32
    %c0_i32_1 = arith.constant 0 : i32
    return %c0_i32, %c0_i32_0 : i32, i32
  }
  func.func @transform_8(%arg0: i32) -> (i32, i32) {
    %c0_i32 = arith.constant 0 : i32
    %c0_i32_0 = arith.constant 0 : i32
    %c0_i32_1 = arith.constant 0 : i32
    return %c0_i32, %c0_i32_0 : i32, i32
  }
  func.func @transform_9(%arg0: i32) -> (i32, i32) {
    %c0_i32 = arith.constant 0 : i32
    %c0_i32_0 = arith.constant 0 : i32
    %c0_i32_1 = arith.constant 0 : i32
    return %c0_i32, %c0_i32_0 : i32, i32
  }
  func.func @transform_10(%arg0: i32) -> (i32, i32) {
    %c0_i32 = arith.constant 0 : i32
    %c0_i32_0 = arith.constant 0 : i32
    %c0_i32_1 = arith.constant 0 : i32
    return %c0_i32, %c0_i32_0 : i32, i32
  }
  func.func @transform_11(%arg0: i32) -> (i32, i32) {
    %c0_i32 = arith.constant 0 : i32
    %c0_i32_0 = arith.constant 0 : i32
    %c0_i32_1 = arith.constant 0 : i32
    return %c0_i32, %c0_i32_0 : i32, i32
  }
  func.func @transform_12(%arg0: i32) -> (i32, i32) {
    %c0_i32 = arith.constant 0 : i32
    %c0_i32_0 = arith.constant 0 : i32
    %c0_i32_1 = arith.constant 0 : i32
    return %c0_i32, %c0_i32_0 : i32, i32
  }
  func.func @transform_13(%arg0: i32) -> (i32, i32) {
    %c0_i32 = arith.constant 0 : i32
    %c0_i32_0 = arith.constant 0 : i32
    %c0_i32_1 = arith.constant 0 : i32
    return %c0_i32, %c0_i32_0 : i32, i32
  }
}

</mosaic_0001>

<llo_original>
// kernel: tpu_custom_call.1
$region0: #{tpu_custom_call.1}
  #allocation0 [shape = 'u32[]', space=smem, size = 0x4, offset = 0x4, fixed_abs, tag = 'smem constant byte address 0x4 - core index']
  #allocation1 [shape = 'u32[72,128]{1,0:T(1,128)}', space=vmem, size = 0x9000, scoped, tag = 'internal scratch']
  %s0 = inlined_call_operand.vmem [shape: f32[16,32], index: 0, kind: input, shape index: {}]
  %s1 = inlined_call_operand.hbm [shape: f32[1,32], index: 1, kind: input, shape index: {}]
  %s2 = inlined_call_operand.vmem [shape: f32[1,32], index: 2, kind: input, shape index: {}]
  %s3 = inlined_call_operand.vmem [shape: bf16[32,96], index: 3, kind: input, shape index: {}]
  %s4 = inlined_call_operand.vmem [shape: f32[1,96], index: 4, kind: input, shape index: {}]
  %s5 = inlined_call_operand.vmem [shape: bf16[32,32], index: 5, kind: input, shape index: {}]
  %s6 = inlined_call_operand.vmem [shape: f32[1,32], index: 6, kind: input, shape index: {}]
  %s7 = inlined_call_operand.vmem [shape: f32[1,32], index: 7, kind: input, shape index: {}]
  %s8 = inlined_call_operand.vmem [shape: f32[1,32], index: 8, kind: input, shape index: {}]
  %s9 = inlined_call_operand.hbm [shape: bf16[32,64], index: 9, kind: input, shape index: {}]
  %s10 = inlined_call_operand.vmem [shape: f32[1,64], index: 10, kind: input, shape index: {}]
  %s11 = inlined_call_operand.vmem [shape: bf16[64,32], index: 11, kind: input, shape index: {}]
  %s12 = inlined_call_operand.vmem [shape: f32[1,32], index: 12, kind: input, shape index: {}]
  %s13 = inlined_call_operand.hbm [shape: f32[16,32], index: 13, kind: output, shape index: {}]
  %s14 = sld [smem:[#allocation0]]
  $region70: #{tpu_custom_call.1} parent=0
    _
  %s16 = ssub.s32 1, %s14
  %s17 = scalar_select 0, %s16, %s14
  $region1: #{tpu_custom_call.1} parent=0
    #allocation2 [shape = 'u8[512]{0}', space=vmem, size = 0x400, scoped, tag = 'input window, operand 1, single buffered']
    #allocation3 [shape = 's32[1]{0}', space=sflag, size = 0x4, scoped, tag = 'scoped memory for tpu_custom_call.1']
    #allocation4 [shape = 's32[1]{0}', space=sflag, size = 0x4, scoped, tag = 'scoped memory for tpu_custom_call.1']
    #allocation5 [shape = 'u8[8192]{0}', space=vmem, size = 0x2000, scoped, tag = 'input window, operand 9, single buffered']
    #allocation6 [shape = 's32[1]{0}', space=sflag, size = 0x4, scoped, tag = 'scoped memory for tpu_custom_call.1']
    #allocation7 [shape = 'u8[8192]{0}', space=vmem, size = 0x2000, scoped, tag = 'output window, operand 0, single buffered']
    %18 = vsyncpa [#allocation3], 0
    %19 = vsyncpa [#allocation6], 0
    %20 = vsyncpa [#allocation4], 0
    // Predicated region
    $region2: #{tpu_custom_call.1} parent=1 // pred_check
      _
    $region3: #{tpu_custom_call.1} parent=1 // pred_check_branch
      %22 = sbr.rel (0) target = $region5
    $region4: #{tpu_custom_call.1} parent=1 // pred_region
      _
    $region5: #{tpu_custom_call.1} parent=1 // pred_fallthru
      _
    // Predicated region
    $region6: #{tpu_custom_call.1} parent=1 // pred_check
      _
    $region7: #{tpu_custom_call.1} parent=1 // pred_check_branch
      %24 = sbr.rel (0) target = $region9
    $region8: #{tpu_custom_call.1} parent=1 // pred_region
      %26 = vsyncadd [#allocation3], 0
      %s28 = sshll.u32 %s1, 4
      %s29 = int_to_ptr.hbm [resolvable:$true] %s28
      %s30 = sshll.u32 [#allocation2], 4
      %s31 = int_to_ptr.vmem [resolvable:$true] %s30
      %33 = dma.hbm_to_vmem [thread:$0]  %s29, 16, %s31, [#allocation3]
    $region9: #{tpu_custom_call.1} parent=1 // pred_fallthru
      _
    // Predicated region
    $region10: #{tpu_custom_call.1} parent=1 // pred_check
      _
    $region11: #{tpu_custom_call.1} parent=1 // pred_check_branch
      %35 = sbr.rel (0) target = $region13
    $region12: #{tpu_custom_call.1} parent=1 // pred_region
      _
    $region13: #{tpu_custom_call.1} parent=1 // pred_fallthru
      _
    // Predicated region
    $region14: #{tpu_custom_call.1} parent=1 // pred_check
      _
    $region15: #{tpu_custom_call.1} parent=1 // pred_check_branch
      %37 = sbr.rel (0) target = $region17
    $region16: #{tpu_custom_call.1} parent=1 // pred_region
      _
    $region17: #{tpu_custom_call.1} parent=1 // pred_fallthru
      _
    // Predicated region
    $region18: #{tpu_custom_call.1} parent=1 // pred_check
      _
    $region19: #{tpu_custom_call.1} parent=1 // pred_check_branch
      %39 = sbr.rel (0) target = $region21
    $region20: #{tpu_custom_call.1} parent=1 // pred_region
      _
    $region21: #{tpu_custom_call.1} parent=1 // pred_fallthru
      _
    // Predicated region
    $region22: #{tpu_custom_call.1} parent=1 // pred_check
      _
    $region23: #{tpu_custom_call.1} parent=1 // pred_check_branch
      %41 = sbr.rel (0) target = $region25
    $region24: #{tpu_custom_call.1} parent=1 // pred_region
      _
    $region25: #{tpu_custom_call.1} parent=1 // pred_fallthru
      _
    // Predicated region
    $region26: #{tpu_custom_call.1} parent=1 // pred_check
      _
    $region27: #{tpu_custom_call.1} parent=1 // pred_check_branch
      %43 = sbr.rel (0) target = $region29
    $region28: #{tpu_custom_call.1} parent=1 // pred_region
      _
    $region29: #{tpu_custom_call.1} parent=1 // pred_fallthru
      _
    // Predicated region
    $region30: #{tpu_custom_call.1} parent=1 // pred_check
      _
    $region31: #{tpu_custom_call.1} parent=1 // pred_check_branch
      %45 = sbr.rel (0) target = $region33
    $region32: #{tpu_custom_call.1} parent=1 // pred_region
      _
    $region33: #{tpu_custom_call.1} parent=1 // pred_fallthru
      _
    // Predicated region
    $region34: #{tpu_custom_call.1} parent=1 // pred_check
      _
    $region35: #{tpu_custom_call.1} parent=1 // pred_check_branch
      %47 = sbr.rel (0) target = $region37
    $region36: #{tpu_custom_call.1} parent=1 // pred_region
      _
    $region37: #{tpu_custom_call.1} parent=1 // pred_fallthru
      _
    // Predicated region
    $region38: #{tpu_custom_call.1} parent=1 // pred_check
      _
    $region39: #{tpu_custom_call.1} parent=1 // pred_check_branch
      %49 = sbr.rel (0) target = $region41
    $region40: #{tpu_custom_call.1} parent=1 // pred_region
      %51 = vsyncadd [#allocation6], 0
      %s52 = sshll.u32 %s9, 4
      %s53 = int_to_ptr.hbm [resolvable:$true] %s52
      %s54 = sshll.u32 [#allocation5], 4
      %s55 = int_to_ptr.vmem [resolvable:$true] %s54
      %60 = dma.hbm_to_vmem [thread:$0]  %s53, 256, %s55, [#allocation6], 64, 64, 4
    $region41: #{tpu_custom_call.1} parent=1 // pred_fallthru
      _
    // Predicated region
    $region42: #{tpu_custom_call.1} parent=1 // pred_check
      _
    $region43: #{tpu_custom_call.1} parent=1 // pred_check_branch
      %62 = sbr.rel (0) target = $region45
    $region44: #{tpu_custom_call.1} parent=1 // pred_region
      _
    $region45: #{tpu_custom_call.1} parent=1 // pred_fallthru
      _
    // Predicated region
    $region46: #{tpu_custom_call.1} parent=1 // pred_check
      _
    $region47: #{tpu_custom_call.1} parent=1 // pred_check_branch
      %64 = sbr.rel (0) target = $region49
    $region48: #{tpu_custom_call.1} parent=1 // pred_region
      _
    $region49: #{tpu_custom_call.1} parent=1 // pred_fallthru
      _
    // Predicated region
    $region50: #{tpu_custom_call.1} parent=1 // pred_check
      _
    $region51: #{tpu_custom_call.1} parent=1 // pred_check_branch
      %66 = sbr.rel (0) target = $region53
    $region52: #{tpu_custom_call.1} parent=1 // pred_region
      _
    $region53: #{tpu_custom_call.1} parent=1 // pred_fallthru
      _
    // Predicated region
    $region54: #{tpu_custom_call.1} parent=1 // pred_check
      _
    $region55: #{tpu_custom_call.1} parent=1 // pred_check_branch
      %68 = sbr.rel (0) target = $region57
    $region56: #{tpu_custom_call.1} parent=1 // pred_region
      %70 = dma.done [#allocation3], 16
    $region57: #{tpu_custom_call.1} parent=1 // pred_fallthru
      _
    // Predicated region
    $region58: #{tpu_custom_call.1} parent=1 // pred_check
      _
    $region59: #{tpu_custom_call.1} parent=1 // pred_check_branch
      %72 = sbr.rel (0) target = $region61
    $region60: #{tpu_custom_call.1} parent=1 // pred_region
      %74 = dma.done [#allocation6], 256
    $region61: #{tpu_custom_call.1} parent=1 // pred_fallthru
      _
    %v76 = vld [vmem:[%s0] sm:$0xff]
    %v77 = vld [vmem:[%s0 + $0x8] sm:$0xff]
    %v78 = vld [vmem:[#allocation2] sm:$0x1]
    %v79 = vld [vmem:[%s2] sm:$0x1]
    %vm80 = vcmask 261120
    %v81 = vsel %vm80, %v76, 0.0
    %82 = vadd.xlane.f32.xlu0 %v81
    %v83 = vpop.xlane.xlu0 %82
    %v84 = vsel %vm80, %v77, 0.0
    %85 = vadd.xlane.f32.xlu0 %v84
    %v86 = vpop.xlane.xlu0 %85
    %v87 = vrcp.pop 32.0
    %v88 = vmul.f32 32.0, %v87
    %v89 = vsub.f32 1.0, %v88
    %v90 = vmul.f32 %v87, %v89
    %v91 = vadd.f32 %v87, %v90
    %vm92 = vweird.f32 %v87
    %v93 = vsel %vm92, %v87, %v91
    %v94 = vmul.f32 %v83, %v93
    %v95 = vmul.f32 %v86, %v93
    %v96 = vsub.f32 %v76, %v94
    %v97 = vsub.f32 %v77, %v95
    %v98 = vmul.f32 %v96, %v96
    %v99 = vmul.f32 %v97, %v97
    %v100 = vsel %vm80, %v98, 0.0
    %101 = vadd.xlane.f32.xlu0 %v100
    %v102 = vpop.xlane.xlu0 %101
    %v103 = vsel %vm80, %v99, 0.0
    %104 = vadd.xlane.f32.xlu0 %v103
    %v105 = vpop.xlane.xlu0 %104
    %v106 = vmul.f32 %v102, %v93
    %v107 = vmul.f32 %v105, %v93
    %v108 = vadd.f32 %v106, 1e-06
    %v109 = vadd.f32 %v107, 1e-06
    %v110 = vrsqrt.pop %v108
    %v111 = vmul.f32 %v110, %v108
    %v112 = vmul.f32 %v111, %v110
    %v113 = vmul.f32 0.5, %v112
    %v114 = vsub.f32 1.5, %v113
    %v115 = vmul.f32 %v110, %v114
    %vm116 = vweird.f32 %v108
    %vm117 = vweird.f32 %v110
    %vm118 = vmor %vm116, %vm117
    %v119 = vsel %vm118, %v110, %v115
    %v120 = vrsqrt.pop %v109
    %v121 = vmul.f32 %v120, %v109
    %v122 = vmul.f32 %v121, %v120
    %v123 = vmul.f32 0.5, %v122
    %v124 = vsub.f32 1.5, %v123
    %v125 = vmul.f32 %v120, %v124
    %vm126 = vweird.f32 %v109
    %vm127 = vweird.f32 %v120
    %vm128 = vmor %vm126, %vm127
    %v129 = vsel %vm128, %v120, %v125
    %v130 = vmul.f32 %v96, %v119
    %v131 = vmul.f32 %v97, %v129
    %v133 = vperm.slane %v78, 0
    %v135 = vmul.f32 %v130, %v133
    %v136 = vmul.f32 %v131, %v133
    %v138 = vperm.slane %v79, 0
    %v140 = vadd.f32 %v135, %v138
    %v141 = vadd.f32 %v136, %v138
    %v142 = vpack.c.bf16 %v141, %v140
    %v143 = vld [vmem:[%s3] sm:$0xf]
    %v144 = vld [vmem:[%s3 + $0x4] sm:$0xf]
    %v145 = vld [vmem:[%s3 + $0x8] sm:$0xf]
    %v146 = vld [vmem:[%s3 + $0xc] sm:$0xf]
    %v147 = vld [vmem:[%s4] sm:$0x1]
    %v149 = vperm.slane %v147, 0
    %v155 = vunpack.c.l.b16 %v143
    %v156 = vunpack.c.l.b16 %v144
    %v157 = vunpack.c.l.b16 %v145
    %v158 = vunpack.c.l.b16 %v146
    %v159 = vpack.c.b16 %v156, %v155
    %v160 = vpack.c.b16 %v158, %v157
    %v164 = vsel %vm80, %v142, 0
    %166 = vmatpush.bf16.msra.mxu0 0
    %167 = vmatpush.bf16.msra.mxu0 0
    %168 = vmatpush.bf16.msra.mxu0 0
    %169 = vmatpush.bf16.msra.mxu0 0
    %170 = vmatpush.bf16.msra.mxu0 0
    %171 = vmatpush.bf16.msra.mxu0 0
    %172 = vmatpush.bf16.msra.mxu0 %v160
    %173 = vmatpush.bf16.msra.mxu0 %v159
    %174 = vmatmul.bf16.gmra.mxu0 %v164
    %v175 = vpop.f32.mrf.mxu0
    %v176 = vadd.f32 %v149, %v175
    %v177 = vpop.f32.mrf.mxu0
    %v178 = vadd.f32 %v149, %v177
    %179 = vdwg.mxu0
    %181 = vrot.lane.b32.xlu0 %v176, 120
    %v182 = vpop.permute.xlu0 %181
    %184 = vrot.lane.b32.xlu0 %v176, 112
    %v185 = vpop.permute.xlu0 %184
    %187 = vrot.lane.b32.xlu0 %v176, 104
    %v188 = vpop.permute.xlu0 %187
    %191 = vrot.lane.b32.xlu0 %v178, 120
    %v192 = vpop.permute.xlu0 %191
    %194 = vrot.lane.b32.xlu0 %v178, 112
    %v195 = vpop.permute.xlu0 %194
    %197 = vrot.lane.b32.xlu0 %v178, 104
    %v198 = vpop.permute.xlu0 %197
    %v200 = vpack.c.bf16 %v176, %v176
    %v201 = vpack.c.bf16 %v182, %v182
    %v202 = vpack.c.bf16 %v185, %v185
    %v203 = vpack.c.bf16 %v188, %v188
    %v204 = vpack.c.bf16 %v178, %v178
    %v205 = vpack.c.bf16 %v192, %v192
    %v206 = vpack.c.bf16 %v195, %v195
    %v207 = vpack.c.bf16 %v198, %v198
    %v209 = vunpack.c.l.b16 %v200
    %v210 = vpack.c.b16 %v209, %v209
    %211 = vrot.lane.b32.xlu0 %v210, 96
    %v212 = vpop.permute.xlu0 %211
    %vm213 = vcmask 64512
    %v215 = vsel %vm213, %v200, 0
    %v218 = vsel %vm213, %v212, 0
    %220 = vmatpush.bf16.xpose.msra.mxu0 0
    %221 = vmatpush.bf16.xpose.msra.mxu0 0
    %222 = vmatpush.bf16.xpose.msra.mxu0 0
    %223 = vmatpush.bf16.xpose.msra.mxu0 0
    %224 = vmatpush.bf16.xpose.msra.mxu0 0
    %225 = vmatpush.bf16.xpose.msra.mxu0 0
    %226 = vmatpush.bf16.xpose.msra.mxu0 0
    %227 = vmatpush.bf16.xpose.msra.mxu0 %v218
    %228 = vmatmul.bf16.gmra.mxu0 %v215
    %v229 = vpop.f32.mrf.mxu0
    %v230 = vadd.f32 0.0, %v229
    %v231 = vpop.f32.mrf.mxu0
    %232 = vdwg.mxu0
    %v234 = vunpack.c.l.b16 %v201
    %v235 = vpack.c.b16 %v234, %v234
    %236 = vrot.lane.b32.xlu0 %v235, 96
    %v237 = vpop.permute.xlu0 %236
    %v239 = vsel %vm213, %v201, 0
    %v242 = vsel %vm213, %v237, 0
    %244 = vmatpush.bf16.xpose.msra.mxu0 0
    %245 = vmatpush.bf16.xpose.msra.mxu0 0
    %246 = vmatpush.bf16.xpose.msra.mxu0 0
    %247 = vmatpush.bf16.xpose.msra.mxu0 0
    %248 = vmatpush.bf16.xpose.msra.mxu0 0
    %249 = vmatpush.bf16.xpose.msra.mxu0 0
    %250 = vmatpush.bf16.xpose.msra.mxu0 0
    %251 = vmatpush.bf16.xpose.msra.mxu0 %v242
    %252 = vmatmul.bf16.gmra.mxu0 %v239
    %v253 = vpop.f32.mrf.mxu0
    %v254 = vadd.f32 0.0, %v253
    %v255 = vpop.f32.mrf.mxu0
    %256 = vdwg.mxu0
    %v258 = vunpack.c.l.b16 %v202
    %v259 = vpack.c.b16 %v258, %v258
    %260 = vrot.lane.b32.xlu0 %v259, 96
    %v261 = vpop.permute.xlu0 %260
    %v263 = vsel %vm213, %v202, 0
    %v266 = vsel %vm213, %v261, 0
    %268 = vmatpush.bf16.xpose.msra.mxu0 0
    %269 = vmatpush.bf16.xpose.msra.mxu0 0
    %270 = vmatpush.bf16.xpose.msra.mxu0 0
    %271 = vmatpush.bf16.xpose.msra.mxu0 0
    %272 = vmatpush.bf16.xpose.msra.mxu0 0
    %273 = vmatpush.bf16.xpose.msra.mxu0 0
    %274 = vmatpush.bf16.xpose.msra.mxu0 0
    %275 = vmatpush.bf16.xpose.msra.mxu0 %v266
    %276 = vmatmul.bf16.gmra.mxu0 %v263
    %v277 = vpop.f32.mrf.mxu0
    %v278 = vadd.f32 0.0, %v277
    %v279 = vpop.f32.mrf.mxu0
    %280 = vdwg.mxu0
    %v282 = vunpack.c.l.b16 %v203
    %v283 = vpack.c.b16 %v282, %v282
    %284 = vrot.lane.b32.xlu0 %v283, 96
    %v285 = vpop.permute.xlu0 %284
    %v287 = vsel %vm213, %v203, 0
    %v290 = vsel %vm213, %v285, 0
    %292 = vmatpush.bf16.xpose.msra.mxu0 0
    %293 = vmatpush.bf16.xpose.msra.mxu0 0
    %294 = vmatpush.bf16.xpose.msra.mxu0 0
    %295 = vmatpush.bf16.xpose.msra.mxu0 0
    %296 = vmatpush.bf16.xpose.msra.mxu0 0
    %297 = vmatpush.bf16.xpose.msra.mxu0 0
    %298 = vmatpush.bf16.xpose.msra.mxu0 0
    %299 = vmatpush.bf16.xpose.msra.mxu0 %v290
    %300 = vmatmul.bf16.gmra.mxu0 %v287
    %v301 = vpop.f32.mrf.mxu0
    %v302 = vadd.f32 0.0, %v301
    %v303 = vpop.f32.mrf.mxu0
    %304 = vdwg.mxu0
    %v306 = vunpack.c.l.b16 %v204
    %v307 = vpack.c.b16 %v306, %v306
    %308 = vrot.lane.b32.xlu0 %v307, 96
    %v309 = vpop.permute.xlu0 %308
    %v311 = vsel %vm213, %v204, 0
    %v314 = vsel %vm213, %v309, 0
    %316 = vmatpush.bf16.xpose.msra.mxu0 0
    %317 = vmatpush.bf16.xpose.msra.mxu0 0
    %318 = vmatpush.bf16.xpose.msra.mxu0 0
    %319 = vmatpush.bf16.xpose.msra.mxu0 0
    %320 = vmatpush.bf16.xpose.msra.mxu0 0
    %321 = vmatpush.bf16.xpose.msra.mxu0 0
    %322 = vmatpush.bf16.xpose.msra.mxu0 0
    %323 = vmatpush.bf16.xpose.msra.mxu0 %v314
    %324 = vmatmul.bf16.gmra.mxu0 %v311
    %v325 = vpop.f32.mrf.mxu0
    %v326 = vadd.f32 0.0, %v325
    %v327 = vpop.f32.mrf.mxu0
    %328 = vdwg.mxu0
    %v330 = vunpack.c.l.b16 %v205
    %v331 = vpack.c.b16 %v330, %v330
    %332 = vrot.lane.b32.xlu0 %v331, 96
    %v333 = vpop.permute.xlu0 %332
    %v335 = vsel %vm213, %v205, 0
    %v338 = vsel %vm213, %v333, 0
    %340 = vmatpush.bf16.xpose.msra.mxu0 0
    %341 = vmatpush.bf16.xpose.msra.mxu0 0
    %342 = vmatpush.bf16.xpose.msra.mxu0 0
    %343 = vmatpush.bf16.xpose.msra.mxu0 0
    %344 = vmatpush.bf16.xpose.msra.mxu0 0
    %345 = vmatpush.bf16.xpose.msra.mxu0 0
    %346 = vmatpush.bf16.xpose.msra.mxu0 0
    %347 = vmatpush.bf16.xpose.msra.mxu0 %v338
    %348 = vmatmul.bf16.gmra.mxu0 %v335
    %v349 = vpop.f32.mrf.mxu0
    %v350 = vadd.f32 0.0, %v349
    %v351 = vpop.f32.mrf.mxu0
    %352 = vdwg.mxu0
    %v354 = vunpack.c.l.b16 %v206
    %v355 = vpack.c.b16 %v354, %v354
    %356 = vrot.lane.b32.xlu0 %v355, 96
    %v357 = vpop.permute.xlu0 %356
    %v359 = vsel %vm213, %v206, 0
    %v362 = vsel %vm213, %v357, 0
    %364 = vmatpush.bf16.xpose.msra.mxu0 0
    %365 = vmatpush.bf16.xpose.msra.mxu0 0
    %366 = vmatpush.bf16.xpose.msra.mxu0 0
    %367 = vmatpush.bf16.xpose.msra.mxu0 0
    %368 = vmatpush.bf16.xpose.msra.mxu0 0
    %369 = vmatpush.bf16.xpose.msra.mxu0 0
    %370 = vmatpush.bf16.xpose.msra.mxu0 0
    %371 = vmatpush.bf16.xpose.msra.mxu0 %v362
    %372 = vmatmul.bf16.gmra.mxu0 %v359
    %v373 = vpop.f32.mrf.mxu0
    %v374 = vadd.f32 0.0, %v373
    %v375 = vpop.f32.mrf.mxu0
    %376 = vdwg.mxu0
    %v378 = vunpack.c.l.b16 %v207
    %v379 = vpack.c.b16 %v378, %v378
    %380 = vrot.lane.b32.xlu0 %v379, 96
    %v381 = vpop.permute.xlu0 %380
    %v383 = vsel %vm213, %v207, 0
    %v386 = vsel %vm213, %v381, 0
    %388 = vmatpush.bf16.xpose.msra.mxu0 0
    %389 = vmatpush.bf16.xpose.msra.mxu0 0
    %390 = vmatpush.bf16.xpose.msra.mxu0 0
    %391 = vmatpush.bf16.xpose.msra.mxu0 0
    %392 = vmatpush.bf16.xpose.msra.mxu0 0
    %393 = vmatpush.bf16.xpose.msra.mxu0 0
    %394 = vmatpush.bf16.xpose.msra.mxu0 0
    %395 = vmatpush.bf16.xpose.msra.mxu0 %v386
    %396 = vmatmul.bf16.gmra.mxu0 %v383
    %v397 = vpop.f32.mrf.mxu0
    %v398 = vadd.f32 0.0, %v397
    %v399 = vpop.f32.mrf.mxu0
    %400 = vdwg.mxu0
    %v401 = vmul.f32 %v230, 0.35355338
    %v402 = vmul.f32 %v254, 0.35355338
    %v403 = vmul.f32 %v278, 0.35355338
    %v404 = vmul.f32 %v302, 0.35355338
    %v405 = vmul.f32 %v326, 0.35355338
    %v406 = vmul.f32 %v350, 0.35355338
    %v407 = vmul.f32 %v374, 0.35355338
    %v408 = vmul.f32 %v398, 0.35355338
    %v409 = vsel %vm213, %v401, -inf
    %410 = vmax.xlane.f32.xlu0 %v409
    %v411 = vpop.xlane.xlu0 %410
    %v412 = vsel %vm213, %v402, -inf
    %413 = vmax.xlane.f32.xlu0 %v412
    %v414 = vpop.xlane.xlu0 %413
    %v415 = vsel %vm213, %v403, -inf
    %416 = vmax.xlane.f32.xlu0 %v415
    %v417 = vpop.xlane.xlu0 %416
    %v418 = vsel %vm213, %v404, -inf
    %419 = vmax.xlane.f32.xlu0 %v418
    %v420 = vpop.xlane.xlu0 %419
    %v421 = vsel %vm213, %v405, -inf
    %422 = vmax.xlane.f32.xlu0 %v421
    %v423 = vpop.xlane.xlu0 %422
    %v424 = vsel %vm213, %v406, -inf
    %425 = vmax.xlane.f32.xlu0 %v424
    %v426 = vpop.xlane.xlu0 %425
    %v427 = vsel %vm213, %v407, -inf
    %428 = vmax.xlane.f32.xlu0 %v427
    %v429 = vpop.xlane.xlu0 %428
    %v430 = vsel %vm213, %v408, -inf
    %431 = vmax.xlane.f32.xlu0 %v430
    %v432 = vpop.xlane.xlu0 %431
    %v433 = vsub.f32 %v401, %v411
    %v434 = vsub.f32 %v402, %v414
    %v435 = vsub.f32 %v403, %v417
    %v436 = vsub.f32 %v404, %v420
    %v437 = vsub.f32 %v405, %v423
    %v438 = vsub.f32 %v406, %v426
    %v439 = vsub.f32 %v407, %v429
    %v440 = vsub.f32 %v408, %v432
    %v441 = vmul.f32 %v433, 1.442695
    %v442 = vpow.pop %v441
    %v443 = vmul.f32 %v434, 1.442695
    %v444 = vpow.pop %v443
    %v445 = vmul.f32 %v435, 1.442695
    %v446 = vpow.pop %v445
    %v447 = vmul.f32 %v436, 1.442695
    %v448 = vpow.pop %v447
    %v449 = vmul.f32 %v437, 1.442695
    %v450 = vpow.pop %v449
    %v451 = vmul.f32 %v438, 1.442695
    %v452 = vpow.pop %v451
    %v453 = vmul.f32 %v439, 1.442695
    %v454 = vpow.pop %v453
    %v455 = vmul.f32 %v440, 1.442695
    %v456 = vpow.pop %v455
    %v457 = vsel %vm213, %v442, 0.0
    %458 = vadd.xlane.f32.xlu0 %v457
    %v459 = vpop.xlane.xlu0 %458
    %v460 = vsel %vm213, %v444, 0.0
    %461 = vadd.xlane.f32.xlu0 %v460
    %v462 = vpop.xlane.xlu0 %461
    %v463 = vsel %vm213, %v446, 0.0
    %464 = vadd.xlane.f32.xlu0 %v463
    %v465 = vpop.xlane.xlu0 %464
    %v466 = vsel %vm213, %v448, 0.0
    %467 = vadd.xlane.f32.xlu0 %v466
    %v468 = vpop.xlane.xlu0 %467
    %v469 = vsel %vm213, %v450, 0.0
    %470 = vadd.xlane.f32.xlu0 %v469
    %v471 = vpop.xlane.xlu0 %470
    %v472 = vsel %vm213, %v452, 0.0
    %473 = vadd.xlane.f32.xlu0 %v472
    %v474 = vpop.xlane.xlu0 %473
    %v475 = vsel %vm213, %v454, 0.0
    %476 = vadd.xlane.f32.xlu0 %v475
    %v477 = vpop.xlane.xlu0 %476
    %v478 = vsel %vm213, %v456, 0.0
    %479 = vadd.xlane.f32.xlu0 %v478
    %v480 = vpop.xlane.xlu0 %479
    %v481 = vpack.c.bf16 %v442, %v442
    %v482 = vpack.c.bf16 %v444, %v444
    %v483 = vpack.c.bf16 %v446, %v446
    %v484 = vpack.c.bf16 %v448, %v448
    %v485 = vpack.c.bf16 %v450, %v450
    %v486 = vpack.c.bf16 %v452, %v452
    %v487 = vpack.c.bf16 %v454, %v454
    %v488 = vpack.c.bf16 %v456, %v456
    %489 = vrot.lane.b32.xlu0 %v210, 64
    %v490 = vpop.permute.xlu0 %489
    %v492 = vsel %vm213, %v481, 0
    %vm494 = vcmask 1043456
    %v496 = vsel %vm494, %v490, 0
    %498 = vmatpush.bf16.msra.mxu0 0
    %499 = vmatpush.bf16.msra.mxu0 0
    %500 = vmatpush.bf16.msra.mxu0 0
    %501 = vmatpush.bf16.msra.mxu0 0
    %502 = vmatpush.bf16.msra.mxu0 0
    %503 = vmatpush.bf16.msra.mxu0 0
    %504 = vmatpush.bf16.msra.mxu0 0
    %505 = vmatpush.bf16.msra.mxu0 %v496
    %506 = vmatmul.bf16.gmra.mxu0 %v492
    %v507 = vpop.f32.mrf.mxu0
    %v508 = vadd.f32 0.0, %v507
    %v509 = vpop.f32.mrf.mxu0
    %510 = vdwg.mxu0
    %511 = vrot.lane.b32.xlu0 %v235, 64
    %v512 = vpop.permute.xlu0 %511
    %v514 = vsel %vm213, %v482, 0
    %v517 = vsel %vm494, %v512, 0
    %519 = vmatpush.bf16.msra.mxu0 0
    %520 = vmatpush.bf16.msra.mxu0 0
    %521 = vmatpush.bf16.msra.mxu0 0
    %522 = vmatpush.bf16.msra.mxu0 0
    %523 = vmatpush.bf16.msra.mxu0 0
    %524 = vmatpush.bf16.msra.mxu0 0
    %525 = vmatpush.bf16.msra.mxu0 0
    %526 = vmatpush.bf16.msra.mxu0 %v517
    %527 = vmatmul.bf16.gmra.mxu0 %v514
    %v528 = vpop.f32.mrf.mxu0
    %v529 = vadd.f32 0.0, %v528
    %v530 = vpop.f32.mrf.mxu0
    %531 = vdwg.mxu0
    %532 = vrot.lane.b32.xlu0 %v259, 64
    %v533 = vpop.permute.xlu0 %532
    %v535 = vsel %vm213, %v483, 0
    %v538 = vsel %vm494, %v533, 0
    %540 = vmatpush.bf16.msra.mxu0 0
    %541 = vmatpush.bf16.msra.mxu0 0
    %542 = vmatpush.bf16.msra.mxu0 0
    %543 = vmatpush.bf16.msra.mxu0 0
    %544 = vmatpush.bf16.msra.mxu0 0
    %545 = vmatpush.bf16.msra.mxu0 0
    %546 = vmatpush.bf16.msra.mxu0 0
    %547 = vmatpush.bf16.msra.mxu0 %v538
    %548 = vmatmul.bf16.gmra.mxu0 %v535
    %v549 = vpop.f32.mrf.mxu0
    %v550 = vadd.f32 0.0, %v549
    %v551 = vpop.f32.mrf.mxu0
    %552 = vdwg.mxu0
    %553 = vrot.lane.b32.xlu0 %v283, 64
    %v554 = vpop.permute.xlu0 %553
    %v556 = vsel %vm213, %v484, 0
    %v559 = vsel %vm494, %v554, 0
    %561 = vmatpush.bf16.msra.mxu0 0
    %562 = vmatpush.bf16.msra.mxu0 0
    %563 = vmatpush.bf16.msra.mxu0 0
    %564 = vmatpush.bf16.msra.mxu0 0
    %565 = vmatpush.bf16.msra.mxu0 0
    %566 = vmatpush.bf16.msra.mxu0 0
    %567 = vmatpush.bf16.msra.mxu0 0
    %568 = vmatpush.bf16.msra.mxu0 %v559
    %569 = vmatmul.bf16.gmra.mxu0 %v556
    %v570 = vpop.f32.mrf.mxu0
    %v571 = vadd.f32 0.0, %v570
    %v572 = vpop.f32.mrf.mxu0
    %573 = vdwg.mxu0
    %574 = vrot.lane.b32.xlu0 %v307, 64
    %v575 = vpop.permute.xlu0 %574
    %v577 = vsel %vm213, %v485, 0
    %v580 = vsel %vm494, %v575, 0
    %582 = vmatpush.bf16.msra.mxu0 0
    %583 = vmatpush.bf16.msra.mxu0 0
    %584 = vmatpush.bf16.msra.mxu0 0
    %585 = vmatpush.bf16.msra.mxu0 0
    %586 = vmatpush.bf16.msra.mxu0 0
    %587 = vmatpush.bf16.msra.mxu0 0
    %588 = vmatpush.bf16.msra.mxu0 0
    %589 = vmatpush.bf16.msra.mxu0 %v580
    %590 = vmatmul.bf16.gmra.mxu0 %v577
    %v591 = vpop.f32.mrf.mxu0
    %v592 = vadd.f32 0.0, %v591
    %v593 = vpop.f32.mrf.mxu0
    %594 = vdwg.mxu0
    %595 = vrot.lane.b32.xlu0 %v331, 64
    %v596 = vpop.permute.xlu0 %595
    %v598 = vsel %vm213, %v486, 0
    %v601 = vsel %vm494, %v596, 0
    %603 = vmatpush.bf16.msra.mxu0 0
    %604 = vmatpush.bf16.msra.mxu0 0
    %605 = vmatpush.bf16.msra.mxu0 0
    %606 = vmatpush.bf16.msra.mxu0 0
    %607 = vmatpush.bf16.msra.mxu0 0
    %608 = vmatpush.bf16.msra.mxu0 0
    %609 = vmatpush.bf16.msra.mxu0 0
    %610 = vmatpush.bf16.msra.mxu0 %v601
    %611 = vmatmul.bf16.gmra.mxu0 %v598
    %v612 = vpop.f32.mrf.mxu0
    %v613 = vadd.f32 0.0, %v612
    %v614 = vpop.f32.mrf.mxu0
    %615 = vdwg.mxu0
    %616 = vrot.lane.b32.xlu0 %v355, 64
    %v617 = vpop.permute.xlu0 %616
    %v619 = vsel %vm213, %v487, 0
    %v622 = vsel %vm494, %v617, 0
    %624 = vmatpush.bf16.msra.mxu0 0
    %625 = vmatpush.bf16.msra.mxu0 0
    %626 = vmatpush.bf16.msra.mxu0 0
    %627 = vmatpush.bf16.msra.mxu0 0
    %628 = vmatpush.bf16.msra.mxu0 0
    %629 = vmatpush.bf16.msra.mxu0 0
    %630 = vmatpush.bf16.msra.mxu0 0
    %631 = vmatpush.bf16.msra.mxu0 %v622
    %632 = vmatmul.bf16.gmra.mxu0 %v619
    %v633 = vpop.f32.mrf.mxu0
    %v634 = vadd.f32 0.0, %v633
    %v635 = vpop.f32.mrf.mxu0
    %636 = vdwg.mxu0
    %637 = vrot.lane.b32.xlu0 %v379, 64
    %v638 = vpop.permute.xlu0 %637
    %v640 = vsel %vm213, %v488, 0
    %v643 = vsel %vm494, %v638, 0
    %645 = vmatpush.bf16.msra.mxu0 0
    %646 = vmatpush.bf16.msra.mxu0 0
    %647 = vmatpush.bf16.msra.mxu0 0
    %648 = vmatpush.bf16.msra.mxu0 0
    %649 = vmatpush.bf16.msra.mxu0 0
    %650 = vmatpush.bf16.msra.mxu0 0
    %651 = vmatpush.bf16.msra.mxu0 0
    %652 = vmatpush.bf16.msra.mxu0 %v643
    %653 = vmatmul.bf16.gmra.mxu0 %v640
    %v654 = vpop.f32.mrf.mxu0
    %v655 = vadd.f32 0.0, %v654
    %v656 = vpop.f32.mrf.mxu0
    %657 = vdwg.mxu0
    %v658 = vrcp.pop %v459
    %v659 = vrcp.pop %v462
    %v660 = vrcp.pop %v465
    %v661 = vrcp.pop %v468
    %v662 = vrcp.pop %v471
    %v663 = vrcp.pop %v474
    %v664 = vrcp.pop %v477
    %v665 = vrcp.pop %v480
    %v666 = vmul.f32 %v508, %v658
    %v667 = vmul.f32 %v529, %v659
    %v668 = vmul.f32 %v550, %v660
    %v669 = vmul.f32 %v571, %v661
    %v670 = vmul.f32 %v592, %v662
    %v671 = vmul.f32 %v613, %v663
    %v672 = vmul.f32 %v634, %v664
    %v673 = vmul.f32 %v655, %v665
    %675 = vrot.lane.b32.xlu0 %v667, 8
    %v676 = vpop.permute.xlu0 %675
    %679 = vrot.lane.b32.xlu0 %v668, 16
    %v680 = vpop.permute.xlu0 %679
    %683 = vrot.lane.b32.xlu0 %v669, 24
    %v684 = vpop.permute.xlu0 %683
    %v686 = vsel %vm213, %v666, %v676
    %vm687 = vcmask 130048
    %v688 = vsel %vm687, %v686, %v680
    %vm689 = vcmask 195584
    %v690 = vsel %vm689, %v688, %v684
    %692 = vrot.lane.b32.xlu0 %v671, 8
    %v693 = vpop.permute.xlu0 %692
    %696 = vrot.lane.b32.xlu0 %v672, 16
    %v697 = vpop.permute.xlu0 %696
    %700 = vrot.lane.b32.xlu0 %v673, 24
    %v701 = vpop.permute.xlu0 %700
    %v703 = vsel %vm213, %v670, %v693
    %v704 = vsel %vm687, %v703, %v697
    %v705 = vsel %vm689, %v704, %v701
    %v706 = vpack.c.bf16 %v705, %v690
    %v707 = vld [vmem:[%s5] sm:$0xf]
    %v708 = vld [vmem:[%s5 + $0x4] sm:$0xf]
    %v709 = vld [vmem:[%s5 + $0x8] sm:$0xf]
    %v710 = vld [vmem:[%s5 + $0xc] sm:$0xf]
    %v711 = vld [vmem:[%s6] sm:$0x1]
    %v713 = vperm.slane %v711, 0
    %v719 = vunpack.c.l.b16 %v707
    %v720 = vunpack.c.l.b16 %v708
    %v721 = vunpack.c.l.b16 %v709
    %v722 = vunpack.c.l.b16 %v710
    %v723 = vpack.c.b16 %v720, %v719
    %v724 = vpack.c.b16 %v722, %v721
    %v728 = vsel %vm80, %v706, 0
    %730 = vmatpush.bf16.msra.mxu0 0
    %731 = vmatpush.bf16.msra.mxu0 0
    %732 = vmatpush.bf16.msra.mxu0 0
    %733 = vmatpush.bf16.msra.mxu0 0
    %734 = vmatpush.bf16.msra.mxu0 0
    %735 = vmatpush.bf16.msra.mxu0 0
    %736 = vmatpush.bf16.msra.mxu0 %v724
    %737 = vmatpush.bf16.msra.mxu0 %v723
    %738 = vmatmul.bf16.gmra.mxu0 %v728
    %v739 = vpop.f32.mrf.mxu0
    %v740 = vadd.f32 %v713, %v739
    %v741 = vpop.f32.mrf.mxu0
    %v742 = vadd.f32 %v713, %v741
    %743 = vdwg.mxu0
    %v744 = vadd.f32 %v76, %v740
    %v745 = vadd.f32 %v77, %v742
    %v746 = vld [vmem:[%s7] sm:$0x1]
    %v747 = vld [vmem:[%s8] sm:$0x1]
    %v748 = vsel %vm80, %v744, 0.0
    %749 = vadd.xlane.f32.xlu0 %v748
    %v750 = vpop.xlane.xlu0 %749
    %v751 = vsel %vm80, %v745, 0.0
    %752 = vadd.xlane.f32.xlu0 %v751
    %v753 = vpop.xlane.xlu0 %752
    %v754 = vmul.f32 %v750, %v93
    %v755 = vmul.f32 %v753, %v93
    %v756 = vsub.f32 %v744, %v754
    %v757 = vsub.f32 %v745, %v755
    %v758 = vmul.f32 %v756, %v756
    %v759 = vmul.f32 %v757, %v757
    %v760 = vsel %vm80, %v758, 0.0
    %761 = vadd.xlane.f32.xlu0 %v760
    %v762 = vpop.xlane.xlu0 %761
    %v763 = vsel %vm80, %v759, 0.0
    %764 = vadd.xlane.f32.xlu0 %v763
    %v765 = vpop.xlane.xlu0 %764
    %v766 = vmul.f32 %v762, %v93
    %v767 = vmul.f32 %v765, %v93
    %v768 = vadd.f32 %v766, 1e-06
    %v769 = vadd.f32 %v767, 1e-06
    %v770 = vrsqrt.pop %v768
    %v771 = vmul.f32 %v770, %v768
    %v772 = vmul.f32 %v771, %v770
    %v773 = vmul.f32 0.5, %v772
    %v774 = vsub.f32 1.5, %v773
    %v775 = vmul.f32 %v770, %v774
    %vm776 = vweird.f32 %v768
    %vm777 = vweird.f32 %v770
    %vm778 = vmor %vm776, %vm777
    %v779 = vsel %vm778, %v770, %v775
    %v780 = vrsqrt.pop %v769
    %v781 = vmul.f32 %v780, %v769
    %v782 = vmul.f32 %v781, %v780
    %v783 = vmul.f32 0.5, %v782
    %v784 = vsub.f32 1.5, %v783
    %v785 = vmul.f32 %v780, %v784
    %vm786 = vweird.f32 %v769
    %vm787 = vweird.f32 %v780
    %vm788 = vmor %vm786, %vm787
    %v789 = vsel %vm788, %v780, %v785
    %v790 = vmul.f32 %v756, %v779
    %v791 = vmul.f32 %v757, %v789
    %v793 = vperm.slane %v746, 0
    %v795 = vmul.f32 %v790, %v793
    %v796 = vmul.f32 %v791, %v793
    %v798 = vperm.slane %v747, 0
    %v800 = vadd.f32 %v795, %v798
    %v801 = vadd.f32 %v796, %v798
    %v802 = vpack.c.bf16 %v801, %v800
    %v803 = vld [vmem:[#allocation5] sm:$0xf]
    %v804 = vld [vmem:[#allocation5 + $0x4] sm:$0xf]
    %v805 = vld [vmem:[#allocation5 + $0x8] sm:$0xf]
    %v806 = vld [vmem:[#allocation5 + $0xc] sm:$0xf]
    %v807 = vld [vmem:[%s10] sm:$0x1]
    %v809 = vperm.slane %v807, 0
    %v815 = vunpack.c.l.b16 %v803
    %v816 = vunpack.c.l.b16 %v804
    %v817 = vunpack.c.l.b16 %v805
    %v818 = vunpack.c.l.b16 %v806
    %v819 = vpack.c.b16 %v816, %v815
    %v820 = vpack.c.b16 %v818, %v817
    %v824 = vsel %vm80, %v802, 0
    %826 = vmatpush.bf16.msra.mxu0 0
    %827 = vmatpush.bf16.msra.mxu0 0
    %828 = vmatpush.bf16.msra.mxu0 0
    %829 = vmatpush.bf16.msra.mxu0 0
    %830 = vmatpush.bf16.msra.mxu0 0
    %831 = vmatpush.bf16.msra.mxu0 0
    %832 = vmatpush.bf16.msra.mxu0 %v820
    %833 = vmatpush.bf16.msra.mxu0 %v819
    %834 = vmatmul.bf16.gmra.mxu0 %v824
    %v835 = vpop.f32.mrf.mxu0
    %v836 = vadd.f32 %v809, %v835
    %v837 = vpop.f32.mrf.mxu0
    %v838 = vadd.f32 %v809, %v837
    %839 = vdwg.mxu0
    %v840 = vmul.f32 %v836, 0.5
    %v841 = vmul.f32 %v838, 0.5
    %v842 = vmul.f32 %v836, 0.044715
    %v843 = vmul.f32 %v838, 0.044715
    %v844 = vmul.f32 %v842, %v836
    %v845 = vmul.f32 %v843, %v838
    %v846 = vmul.f32 %v844, %v836
    %v847 = vmul.f32 %v845, %v838
    %v848 = vadd.f32 %v836, %v846
    %v849 = vadd.f32 %v838, %v847
    %v850 = vmul.f32 %v848, 0.7978846
    %v851 = vmul.f32 %v849, 0.7978846
    %v852 = vtanh.pop %v850
    %v853 = vtanh.pop %v851
    %v854 = vadd.f32 %v852, 1.0
    %v855 = vadd.f32 %v853, 1.0
    %v856 = vmul.f32 %v840, %v854
    %v857 = vmul.f32 %v841, %v855
    %v858 = vpack.c.bf16 %v857, %v856
    %v859 = vld [vmem:[%s11] sm:$0xf]
    %v860 = vld [vmem:[%s11 + $0x4] sm:$0xf]
    %v861 = vld [vmem:[%s11 + $0x8] sm:$0xf]
    %v862 = vld [vmem:[%s11 + $0xc] sm:$0xf]
    %v863 = vld [vmem:[%s11 + $0x10] sm:$0xf]
    %v864 = vld [vmem:[%s11 + $0x14] sm:$0xf]
    %v865 = vld [vmem:[%s11 + $0x18] sm:$0xf]
    %v866 = vld [vmem:[%s11 + $0x1c] sm:$0xf]
    %v867 = vld [vmem:[%s12] sm:$0x1]
    %v869 = vperm.slane %v867, 0
    %v879 = vunpack.c.l.b16 %v859
    %v880 = vunpack.c.l.b16 %v860
    %v881 = vunpack.c.l.b16 %v861
    %v882 = vunpack.c.l.b16 %v862
    %v883 = vunpack.c.l.b16 %v863
    %v884 = vunpack.c.l.b16 %v864
    %v885 = vunpack.c.l.b16 %v865
    %v886 = vunpack.c.l.b16 %v866
    %v887 = vpack.c.b16 %v880, %v879
    %v888 = vpack.c.b16 %v882, %v881
    %v889 = vpack.c.b16 %v884, %v883
    %v890 = vpack.c.b16 %v886, %v885
    %vm895 = vcmask 523264
    %v897 = vsel %vm895, %v858, 0
    %899 = vmatpush.bf16.msra.mxu0 0
    %900 = vmatpush.bf16.msra.mxu0 0
    %901 = vmatpush.bf16.msra.mxu0 0
    %902 = vmatpush.bf16.msra.mxu0 0
    %903 = vmatpush.bf16.msra.mxu0 %v890
    %904 = vmatpush.bf16.msra.mxu0 %v889
    %905 = vmatpush.bf16.msra.mxu0 %v888
    %906 = vmatpush.bf16.msra.mxu0 %v887
    %907 = vmatmul.bf16.gmra.mxu0 %v897
    %v908 = vpop.f32.mrf.mxu0
    %v909 = vadd.f32 %v869, %v908
    %v910 = vpop.f32.mrf.mxu0
    %v911 = vadd.f32 %v869, %v910
    %912 = vdwg.mxu0
    %v913 = vadd.f32 %v744, %v909
    %v914 = vadd.f32 %v745, %v911
    %915 = vst.msk [vmem:[#allocation7] sm:$0xff] %vm80, %v913
    %916 = vst.msk [vmem:[#allocation7 + $0x8] sm:$0xff] %vm80, %v914
    // Predicated region
    $region62: #{tpu_custom_call.1} parent=1 // pred_check
      _
    $region63: #{tpu_custom_call.1} parent=1 // pred_check_branch
      %918 = sbr.rel (0) target = $region65
    $region64: #{tpu_custom_call.1} parent=1 // pred_region
      %920 = vsyncadd [#allocation4], 0
      %s921 = sshll.u32 [#allocation7], 4
      %s922 = int_to_ptr.vmem [resolvable:$true] %s921
      %s923 = sshll.u32 %s13, 4
      %s924 = int_to_ptr.hbm [resolvable:$true] %s923
      %929 = dma.vmem_to_hbm [thread:$0]  %s922, 256, %s924, [#allocation4], 128, 128, 8
    $region65: #{tpu_custom_call.1} parent=1 // pred_fallthru
      _
    // Predicated region
    $region66: #{tpu_custom_call.1} parent=1 // pred_check
      _
    $region67: #{tpu_custom_call.1} parent=1 // pred_check_branch
      %931 = sbr.rel (0) target = $region69
    $region68: #{tpu_custom_call.1} parent=1 // pred_region
      %933 = dma.done [#allocation4], 256
    $region69: #{tpu_custom_call.1} parent=1 // pred_fallthru
      _
    %934 = vsyncpa [#allocation3], 1
    %935 = vsyncpa [#allocation6], 1
    %936 = vsyncpa [#allocation4], 1

</llo_original>
